<compile_context>
chip_gen: v6e
topology: v6e:2x2x1
jax: 0.10.0
libtpu: 0.0.40
codegen_flags: <defaults>
</compile_context>

<pallas_src>
from functools import partial

import jax
import jax.numpy as jnp
from jax.experimental import pallas as pl
from jax.experimental.pallas import tpu as pltpu


def conv1x1_sigmoid_kernel(x_ref, w_ref, b_ref, o_ref):
    # x_ref: [N, Cin] f32, w_ref: [Cin, Cout_pad] bf16, b_ref: [1, Cout_pad] f32,
    # o_ref: [N, Cout_pad] f32
    x_bf16 = x_ref[...].astype(jnp.bfloat16)
    # MXU matvec with f32 accumulation (review: keep the M=1 dot on the MXU).
    y = jnp.dot(x_bf16, w_ref[...], preferred_element_type=jnp.float32)
    y = y + b_ref[...]
    # sigmoid(y) = 0.5 * (1 + tanh(y / 2)) : one EUP push, saturates cleanly.
    o_ref[...] = (0.5 * jnp.tanh(0.5 * y) + 0.5).astype(o_ref.dtype)


def pack_conv1x1_params(weight, bias):
    """One-time packing, NOT in the per-call path.

    [Cout, Cin, 1, 1] f32 weight, [Cout] f32 bias
      -> ([Cin, Cout_pad] bf16 weight, [1, Cout_pad] f32 bias)
    with Cout_pad = next multiple of 128 (1824 -> 1920) and zero padding, so
    every lane-tile is full and every output store is unmasked.
    """
    cout, cin = weight.shape[0], weight.shape[1]
    cout_pad = ((cout + 127) // 128) * 128
    w2d = weight.reshape(cout, cin).T.astype(jnp.bfloat16)          # [Cin, Cout]
    w_packed = jnp.zeros((cin, cout_pad), jnp.bfloat16).at[:, :cout].set(w2d)
    b_packed = jnp.zeros((1, cout_pad), jnp.float32).at[0, :cout].set(
        bias.astype(jnp.float32))
    return w_packed, b_packed


@partial(jax.jit, static_argnames=("cout",))
def conv2d_1x1_sigmoid(x_nchw, w_packed, b_packed, *, cout):
    """x_nchw: [N, Cin, 1, 1] f32; w_packed: [Cin, Cout_pad] bf16; b_packed: [1, Cout_pad] f32."""
    n, cin, h, w = x_nchw.shape
    assert h == 1 and w == 1, "this module only sees 1x1 spatial maps"
    cout_pad = w_packed.shape[1]

    x2d = x_nchw.reshape(n, cin)  # [N, Cin]

    bytes_accessed = (
        x2d.size * 4                      # x (f32)
        + w_packed.size * 2               # weight (bf16)
        + b_packed.size * 4               # bias (f32)
        + n * cout_pad * 4                # output (f32)
    )
    cost = pl.CostEstimate(
        flops=2 * n * cin * cout,
        transcendentals=n * cout_pad,     # one tanh per output element
        bytes_accessed=bytes_accessed,
    )

    out_pad = pl.pallas_call(
        conv1x1_sigmoid_kernel,
        out_shape=jax.ShapeDtypeStruct((n, cout_pad), jnp.float32),
        in_specs=[
            pl.BlockSpec(memory_space=pltpu.MemorySpace.VMEM),
            pl.BlockSpec(memory_space=pltpu.MemorySpace.VMEM),
            pl.BlockSpec(memory_space=pltpu.MemorySpace.VMEM),
        ],
        out_specs=pl.BlockSpec(memory_space=pltpu.MemorySpace.VMEM),
        cost_estimate=cost,
    )(x2d, w_packed, b_packed)

    # Slice padded lanes off and restore NCHW.
    return out_pad[:, :cout].reshape(n, cout, 1, 1)


if __name__ == "__main__":
    key = jax.random.PRNGKey(0)
    kx, kw, kb = jax.random.split(key, 3)

    N, CIN, COUT = 1, 76, 1824

    # Deterministic synthetic parameters (shapes match Conv2d(76, 1824, 1x1)).
    x = jax.random.normal(kx, (N, CIN, 1, 1), dtype=jnp.float32)
    # PyTorch-default-ish uniform init scale: 1/sqrt(fan_in)
    bound = 1.0 / (CIN ** 0.5)
    weight = jax.random.uniform(kw, (COUT, CIN, 1, 1), jnp.float32, -bound, bound)
    bias = jax.random.uniform(kb, (COUT,), jnp.float32, -bound, bound)

    # One-time parameter packing (not in the per-call path).
    w_packed, b_packed = pack_conv1x1_params(weight, bias)

    out = conv2d_1x1_sigmoid(x, w_packed, b_packed, cout=COUT)
    out = jax.block_until_ready(out)

    # Reference check in plain JAX (f32).  Tolerance loosened for bf16 weights;
    # sigmoid' <= 0.25 keeps the absolute error tiny.
    ref = jax.nn.sigmoid(
        jnp.einsum("nc,oc->no", x.reshape(N, CIN), weight.reshape(COUT, CIN))
        + bias[None, :]
    ).reshape(N, COUT, 1, 1)
    assert out.shape == (N, COUT, 1, 1)
    assert jnp.allclose(out, ref, atol=2e-2, rtol=2e-2), (
        float(jnp.max(jnp.abs(out - ref))))

    print("KERNEL_OK")
</pallas_src>

<mosaic_0001>
module attributes {stable_mosaic.version = 11 : i64} {
  func.func @conv1x1_sigmoid_kernel(%arg0: memref<1x76xf32, #tpu.memory_space<vmem>>, %arg1: memref<76x1920xbf16, #tpu.memory_space<vmem>>, %arg2: memref<1x1920xf32, #tpu.memory_space<vmem>>, %arg3: memref<1x1920xf32, #tpu.memory_space<vmem>>) attributes {dimension_semantics = [], scalar_prefetch = 0 : i64, scratch_operands = 0 : i64, tpu.core_type = #tpu.core_type<tc>} {
    %c0 = arith.constant 0 : index
    %c0_0 = arith.constant 0 : index
    %0 = vector.load %arg0[%c0, %c0_0] : memref<1x76xf32, #tpu.memory_space<vmem>>, vector<1x76xf32>
    %1 = arith.truncf %0 : vector<1x76xf32> to vector<1x76xbf16>
    %c0_1 = arith.constant 0 : index
    %c0_2 = arith.constant 0 : index
    %2 = vector.load %arg1[%c0_1, %c0_2] : memref<76x1920xbf16, #tpu.memory_space<vmem>>, vector<76x1920xbf16>
    %cst = arith.constant dense<0.000000e+00> : vector<1x1920xf32>
    %3 = tpu.matmul %1, %2, %cst {dimension_numbers = #tpu.dot_dimension_numbers<[1], [0], [0], [1], [0, 0, 1, 1], [], []>} : vector<1x76xbf16>, vector<76x1920xbf16>, vector<1x1920xf32> -> vector<1x1920xf32>
    %c0_3 = arith.constant 0 : index
    %c0_4 = arith.constant 0 : index
    %4 = vector.load %arg2[%c0_3, %c0_4] : memref<1x1920xf32, #tpu.memory_space<vmem>>, vector<1x1920xf32>
    %5 = arith.addf %3, %4 : vector<1x1920xf32>
    %cst_5 = arith.constant 5.000000e-01 : f32
    %6 = vector.broadcast %cst_5 : f32 to vector<1x1920xf32>
    %7 = arith.mulf %6, %5 : vector<1x1920xf32>
    %8 = math.tanh %7 : vector<1x1920xf32>
    %cst_6 = arith.constant 5.000000e-01 : f32
    %9 = vector.broadcast %cst_6 : f32 to vector<1x1920xf32>
    %10 = arith.mulf %9, %8 : vector<1x1920xf32>
    %cst_7 = arith.constant 5.000000e-01 : f32
    %11 = vector.broadcast %cst_7 : f32 to vector<1x1920xf32>
    %12 = arith.addf %10, %11 : vector<1x1920xf32>
    %c0_8 = arith.constant 0 : index
    %c0_9 = arith.constant 0 : index
    %13 = vector.load %arg3[%c0_8, %c0_9] : memref<1x1920xf32, #tpu.memory_space<vmem>>, vector<1x1920xf32>
    tpu.vector_store %arg3[%c0_8, %c0_9], %12 {strides = array<i32>} : memref<1x1920xf32, #tpu.memory_space<vmem>>, vector<1x1920xf32>,
    return
  }
}

</mosaic_0001>

<llo_original>
// kernel: conv2d_1x1_sigmoid.1
$region0: #{conv2d_1x1_sigmoid.1}
  #allocation0 [shape = 'u32[]', space=smem, size = 0x4, offset = 0x4, fixed_abs, tag = 'smem constant byte address 0x4 - core index']
  #allocation1 [shape = 'u32[144,128]{1,0:T(1,128)}', space=vmem, size = 0x12000, scoped, tag = 'internal scratch']
  %s0 = inlined_call_operand.vmem [shape: f32[1,76], index: 0, kind: input, shape index: {}]
  %s1 = inlined_call_operand.hbm [shape: bf16[76,1920], index: 1, kind: input, shape index: {}]
  %s2 = inlined_call_operand.hbm [shape: f32[1,1920], index: 2, kind: input, shape index: {}]
  %s3 = inlined_call_operand.vmem [shape: f32[1,1920], index: 3, kind: output, shape index: {}]
  %s4 = sld [smem:[#allocation0]]
  $region30: #{conv2d_1x1_sigmoid.1} parent=0
    _
  %s6 = ssub.s32 1, %s4
  %s7 = scalar_select 0, %s6, %s4
  $region1: #{conv2d_1x1_sigmoid.1} parent=0
    #allocation2 [shape = 'u8[307200]{0}', space=vmem, size = 0x4b000, scoped, tag = 'input window, operand 1, single buffered']
    #allocation3 [shape = 's32[1]{0}', space=sflag, size = 0x4, scoped, tag = 'scoped memory for conv2d_1x1_sigmoid.1']
    #allocation4 [shape = 'u8[7680]{0}', space=vmem, size = 0x2000, scoped, tag = 'input window, operand 2, single buffered']
    #allocation5 [shape = 's32[1]{0}', space=sflag, size = 0x4, scoped, tag = 'scoped memory for conv2d_1x1_sigmoid.1']
    %8 = vsyncpa [#allocation3], 0
    %9 = vsyncpa [#allocation5], 0
    // Predicated region
    $region2: #{conv2d_1x1_sigmoid.1} parent=1 // pred_check
      _
    $region3: #{conv2d_1x1_sigmoid.1} parent=1 // pred_check_branch
      %11 = sbr.rel (0) target = $region5
    $region4: #{conv2d_1x1_sigmoid.1} parent=1 // pred_region
      _
    $region5: #{conv2d_1x1_sigmoid.1} parent=1 // pred_fallthru
      _
    // Predicated region
    $region6: #{conv2d_1x1_sigmoid.1} parent=1 // pred_check
      _
    $region7: #{conv2d_1x1_sigmoid.1} parent=1 // pred_check_branch
      %13 = sbr.rel (0) target = $region9
    $region8: #{conv2d_1x1_sigmoid.1} parent=1 // pred_region
      %s15 = ssub.s32 9600, 9600
      %16 = vsyncadd [#allocation3], %s15
      %s17 = sshll.u32 [#allocation2], 4
      %s18 = int_to_ptr.vmem [resolvable:$true] %s17
      %23 = dma.hbm_to_vmem [thread:$0]  %s1, 9600, %s18, [#allocation3], 960, 960, 60
    $region9: #{conv2d_1x1_sigmoid.1} parent=1 // pred_fallthru
      _
    // Predicated region
    $region10: #{conv2d_1x1_sigmoid.1} parent=1 // pred_check
      _
    $region11: #{conv2d_1x1_sigmoid.1} parent=1 // pred_check_branch
      %25 = sbr.rel (0) target = $region13
    $region12: #{conv2d_1x1_sigmoid.1} parent=1 // pred_region
      %s27 = ssub.s32 240, 240
      %28 = vsyncadd [#allocation5], %s27
      %s30 = sshll.u32 [#allocation4], 4
      %s31 = int_to_ptr.vmem [resolvable:$true] %s30
      %33 = dma.hbm_to_vmem [thread:$0]  %s2, 240, %s31, [#allocation5]
    $region13: #{conv2d_1x1_sigmoid.1} parent=1 // pred_fallthru
      _
    // Predicated region
    $region14: #{conv2d_1x1_sigmoid.1} parent=1 // pred_check
      _
    $region15: #{conv2d_1x1_sigmoid.1} parent=1 // pred_check_branch
      %35 = sbr.rel (0) target = $region17
    $region16: #{conv2d_1x1_sigmoid.1} parent=1 // pred_region
      %36 = dma.done [#allocation3], 9600
    $region17: #{conv2d_1x1_sigmoid.1} parent=1 // pred_fallthru
      _
    // Predicated region
    $region18: #{conv2d_1x1_sigmoid.1} parent=1 // pred_check
      _
    $region19: #{conv2d_1x1_sigmoid.1} parent=1 // pred_check_branch
      %38 = sbr.rel (0) target = $region21
    $region20: #{conv2d_1x1_sigmoid.1} parent=1 // pred_region
      %39 = dma.done [#allocation5], 240
    $region21: #{conv2d_1x1_sigmoid.1} parent=1 // pred_fallthru
      _
    %v41 = vld [vmem:[%s0] sm:$0x1]
    %v42 = vpack.c.bf16 %v41, %v41
    %v43 = vld [vmem:[#allocation2] sm:$0xff]
    %v44 = vld [vmem:[#allocation2 + $0x8] sm:$0xff]
    %v45 = vld [vmem:[#allocation2 + $0x10] sm:$0xff]
    %v46 = vld [vmem:[#allocation2 + $0x18] sm:$0xff]
    %v47 = vld [vmem:[#allocation2 + $0x20] sm:$0xff]
    %v48 = vld [vmem:[#allocation2 + $0x28] sm:$0xff]
    %v49 = vld [vmem:[#allocation2 + $0x30] sm:$0xff]
    %v50 = vld [vmem:[#allocation2 + $0x38] sm:$0xf]
    %v51 = vld [vmem:[#allocation2 + $0x3c] sm:$0xff]
    %v52 = vld [vmem:[#allocation2 + $0x44] sm:$0xff]
    %v53 = vld [vmem:[#allocation2 + $0x4c] sm:$0xff]
    %v54 = vld [vmem:[#allocation2 + $0x54] sm:$0xff]
    %v55 = vld [vmem:[#allocation2 + $0x5c] sm:$0xff]
    %v56 = vld [vmem:[#allocation2 + $0x64] sm:$0xff]
    %v57 = vld [vmem:[#allocation2 + $0x6c] sm:$0xff]
    %v58 = vld [vmem:[#allocation2 + $0x74] sm:$0xf]
    %v59 = vld [vmem:[#allocation2 + $0x78] sm:$0xff]
    %v60 = vld [vmem:[#allocation2 + $0x80] sm:$0xff]
    %v61 = vld [vmem:[#allocation2 + $0x88] sm:$0xff]
    %v62 = vld [vmem:[#allocation2 + $0x90] sm:$0xff]
    %v63 = vld [vmem:[#allocation2 + $0x98] sm:$0xff]
    %v64 = vld [vmem:[#allocation2 + $0xa0] sm:$0xff]
    %v65 = vld [vmem:[#allocation2 + $0xa8] sm:$0xff]
    %v66 = vld [vmem:[#allocation2 + $0xb0] sm:$0xf]
    %v67 = vld [vmem:[#allocation2 + $0xb4] sm:$0xff]
    %v68 = vld [vmem:[#allocation2 + $0xbc] sm:$0xff]
    %v69 = vld [vmem:[#allocation2 + $0xc4] sm:$0xff]
    %v70 = vld [vmem:[#allocation2 + $0xcc] sm:$0xff]
    %v71 = vld [vmem:[#allocation2 + $0xd4] sm:$0xff]
    %v72 = vld [vmem:[#allocation2 + $0xdc] sm:$0xff]
    %v73 = vld [vmem:[#allocation2 + $0xe4] sm:$0xff]
    %v74 = vld [vmem:[#allocation2 + $0xec] sm:$0xf]
    %v75 = vld [vmem:[#allocation2 + $0xf0] sm:$0xff]
    %v76 = vld [vmem:[#allocation2 + $0xf8] sm:$0xff]
    %v77 = vld [vmem:[#allocation2 + $0x100] sm:$0xff]
    %v78 = vld [vmem:[#allocation2 + $0x108] sm:$0xff]
    %v79 = vld [vmem:[#allocation2 + $0x110] sm:$0xff]
    %v80 = vld [vmem:[#allocation2 + $0x118] sm:$0xff]
    %v81 = vld [vmem:[#allocation2 + $0x120] sm:$0xff]
    %v82 = vld [vmem:[#allocation2 + $0x128] sm:$0xf]
    %v83 = vld [vmem:[#allocation2 + $0x12c] sm:$0xff]
    %v84 = vld [vmem:[#allocation2 + $0x134] sm:$0xff]
    %v85 = vld [vmem:[#allocation2 + $0x13c] sm:$0xff]
    %v86 = vld [vmem:[#allocation2 + $0x144] sm:$0xff]
    %v87 = vld [vmem:[#allocation2 + $0x14c] sm:$0xff]
    %v88 = vld [vmem:[#allocation2 + $0x154] sm:$0xff]
    %v89 = vld [vmem:[#allocation2 + $0x15c] sm:$0xff]
    %v90 = vld [vmem:[#allocation2 + $0x164] sm:$0xf]
    %v91 = vld [vmem:[#allocation2 + $0x168] sm:$0xff]
    %v92 = vld [vmem:[#allocation2 + $0x170] sm:$0xff]
    %v93 = vld [vmem:[#allocation2 + $0x178] sm:$0xff]
    %v94 = vld [vmem:[#allocation2 + $0x180] sm:$0xff]
    %v95 = vld [vmem:[#allocation2 + $0x188] sm:$0xff]
    %v96 = vld [vmem:[#allocation2 + $0x190] sm:$0xff]
    %v97 = vld [vmem:[#allocation2 + $0x198] sm:$0xff]
    %v98 = vld [vmem:[#allocation2 + $0x1a0] sm:$0xf]
    %v99 = vld [vmem:[#allocation2 + $0x1a4] sm:$0xff]
    %v100 = vld [vmem:[#allocation2 + $0x1ac] sm:$0xff]
    %v101 = vld [vmem:[#allocation2 + $0x1b4] sm:$0xff]
    %v102 = vld [vmem:[#allocation2 + $0x1bc] sm:$0xff]
    %v103 = vld [vmem:[#allocation2 + $0x1c4] sm:$0xff]
    %v104 = vld [vmem:[#allocation2 + $0x1cc] sm:$0xff]
    %v105 = vld [vmem:[#allocation2 + $0x1d4] sm:$0xff]
    %v106 = vld [vmem:[#allocation2 + $0x1dc] sm:$0xf]
    %v107 = vld [vmem:[#allocation2 + $0x1e0] sm:$0xff]
    %v108 = vld [vmem:[#allocation2 + $0x1e8] sm:$0xff]
    %v109 = vld [vmem:[#allocation2 + $0x1f0] sm:$0xff]
    %v110 = vld [vmem:[#allocation2 + $0x1f8] sm:$0xff]
    %v111 = vld [vmem:[#allocation2 + $0x200] sm:$0xff]
    %v112 = vld [vmem:[#allocation2 + $0x208] sm:$0xff]
    %v113 = vld [vmem:[#allocation2 + $0x210] sm:$0xff]
    %v114 = vld [vmem:[#allocation2 + $0x218] sm:$0xf]
    %v115 = vld [vmem:[#allocation2 + $0x21c] sm:$0x33]
    %v116 = vld [vmem:[#allocation2 + $0x224] sm:$0x33]
    %v117 = vld [vmem:[#allocation2 + $0x22c] sm:$0x33]
    %v118 = vld [vmem:[#allocation2 + $0x234] sm:$0x33]
    %v119 = vld [vmem:[#allocation2 + $0x23c] sm:$0x33]
    %v120 = vld [vmem:[#allocation2 + $0x244] sm:$0x33]
    %v121 = vld [vmem:[#allocation2 + $0x24c] sm:$0x33]
    %v122 = vld [vmem:[#allocation2 + $0x254] sm:$0x3]
    %v123 = vld [vmem:[#allocation4] sm:$0xff]
    %v124 = vld [vmem:[#allocation4 + $0x8] sm:$0xff]
    %v205 = vunpack.c.l.b16 %v43
    %v206 = vunpack.c.h.b16 %v43
    %v207 = vunpack.c.l.b16 %v44
    %v208 = vunpack.c.h.b16 %v44
    %v209 = vunpack.c.l.b16 %v45
    %v210 = vunpack.c.h.b16 %v45
    %v211 = vunpack.c.l.b16 %v46
    %v212 = vunpack.c.h.b16 %v46
    %v213 = vunpack.c.l.b16 %v47
    %v214 = vunpack.c.h.b16 %v47
    %v215 = vunpack.c.l.b16 %v48
    %v216 = vunpack.c.h.b16 %v48
    %v217 = vunpack.c.l.b16 %v49
    %v218 = vunpack.c.h.b16 %v49
    %v219 = vunpack.c.l.b16 %v50
    %v220 = vunpack.c.l.b16 %v51
    %v221 = vunpack.c.h.b16 %v51
    %v222 = vunpack.c.l.b16 %v52
    %v223 = vunpack.c.h.b16 %v52
    %v224 = vunpack.c.l.b16 %v53
    %v225 = vunpack.c.h.b16 %v53
    %v226 = vunpack.c.l.b16 %v54
    %v227 = vunpack.c.h.b16 %v54
    %v228 = vunpack.c.l.b16 %v55
    %v229 = vunpack.c.h.b16 %v55
    %v230 = vunpack.c.l.b16 %v56
    %v231 = vunpack.c.h.b16 %v56
    %v232 = vunpack.c.l.b16 %v57
    %v233 = vunpack.c.h.b16 %v57
    %v234 = vunpack.c.l.b16 %v58
    %v235 = vunpack.c.l.b16 %v59
    %v236 = vunpack.c.h.b16 %v59
    %v237 = vunpack.c.l.b16 %v60
    %v238 = vunpack.c.h.b16 %v60
    %v239 = vunpack.c.l.b16 %v61
    %v240 = vunpack.c.h.b16 %v61
    %v241 = vunpack.c.l.b16 %v62
    %v242 = vunpack.c.h.b16 %v62
    %v243 = vunpack.c.l.b16 %v63
    %v244 = vunpack.c.h.b16 %v63
    %v245 = vunpack.c.l.b16 %v64
    %v246 = vunpack.c.h.b16 %v64
    %v247 = vunpack.c.l.b16 %v65
    %v248 = vunpack.c.h.b16 %v65
    %v249 = vunpack.c.l.b16 %v66
    %v250 = vunpack.c.l.b16 %v67
    %v251 = vunpack.c.h.b16 %v67
    %v252 = vunpack.c.l.b16 %v68
    %v253 = vunpack.c.h.b16 %v68
    %v254 = vunpack.c.l.b16 %v69
    %v255 = vunpack.c.h.b16 %v69
    %v256 = vunpack.c.l.b16 %v70
    %v257 = vunpack.c.h.b16 %v70
    %v258 = vunpack.c.l.b16 %v71
    %v259 = vunpack.c.h.b16 %v71
    %v260 = vunpack.c.l.b16 %v72
    %v261 = vunpack.c.h.b16 %v72
    %v262 = vunpack.c.l.b16 %v73
    %v263 = vunpack.c.h.b16 %v73
    %v264 = vunpack.c.l.b16 %v74
    %v265 = vunpack.c.l.b16 %v75
    %v266 = vunpack.c.h.b16 %v75
    %v267 = vunpack.c.l.b16 %v76
    %v268 = vunpack.c.h.b16 %v76
    %v269 = vunpack.c.l.b16 %v77
    %v270 = vunpack.c.h.b16 %v77
    %v271 = vunpack.c.l.b16 %v78
    %v272 = vunpack.c.h.b16 %v78
    %v273 = vunpack.c.l.b16 %v79
    %v274 = vunpack.c.h.b16 %v79
    %v275 = vunpack.c.l.b16 %v80
    %v276 = vunpack.c.h.b16 %v80
    %v277 = vunpack.c.l.b16 %v81
    %v278 = vunpack.c.h.b16 %v81
    %v279 = vunpack.c.l.b16 %v82
    %v280 = vunpack.c.l.b16 %v83
    %v281 = vunpack.c.h.b16 %v83
    %v282 = vunpack.c.l.b16 %v84
    %v283 = vunpack.c.h.b16 %v84
    %v284 = vunpack.c.l.b16 %v85
    %v285 = vunpack.c.h.b16 %v85
    %v286 = vunpack.c.l.b16 %v86
    %v287 = vunpack.c.h.b16 %v86
    %v288 = vunpack.c.l.b16 %v87
    %v289 = vunpack.c.h.b16 %v87
    %v290 = vunpack.c.l.b16 %v88
    %v291 = vunpack.c.h.b16 %v88
    %v292 = vunpack.c.l.b16 %v89
    %v293 = vunpack.c.h.b16 %v89
    %v294 = vunpack.c.l.b16 %v90
    %v295 = vunpack.c.l.b16 %v91
    %v296 = vunpack.c.h.b16 %v91
    %v297 = vunpack.c.l.b16 %v92
    %v298 = vunpack.c.h.b16 %v92
    %v299 = vunpack.c.l.b16 %v93
    %v300 = vunpack.c.h.b16 %v93
    %v301 = vunpack.c.l.b16 %v94
    %v302 = vunpack.c.h.b16 %v94
    %v303 = vunpack.c.l.b16 %v95
    %v304 = vunpack.c.h.b16 %v95
    %v305 = vunpack.c.l.b16 %v96
    %v306 = vunpack.c.h.b16 %v96
    %v307 = vunpack.c.l.b16 %v97
    %v308 = vunpack.c.h.b16 %v97
    %v309 = vunpack.c.l.b16 %v98
    %v310 = vunpack.c.l.b16 %v99
    %v311 = vunpack.c.h.b16 %v99
    %v312 = vunpack.c.l.b16 %v100
    %v313 = vunpack.c.h.b16 %v100
    %v314 = vunpack.c.l.b16 %v101
    %v315 = vunpack.c.h.b16 %v101
    %v316 = vunpack.c.l.b16 %v102
    %v317 = vunpack.c.h.b16 %v102
    %v318 = vunpack.c.l.b16 %v103
    %v319 = vunpack.c.h.b16 %v103
    %v320 = vunpack.c.l.b16 %v104
    %v321 = vunpack.c.h.b16 %v104
    %v322 = vunpack.c.l.b16 %v105
    %v323 = vunpack.c.h.b16 %v105
    %v324 = vunpack.c.l.b16 %v106
    %v325 = vunpack.c.l.b16 %v107
    %v326 = vunpack.c.h.b16 %v107
    %v327 = vunpack.c.l.b16 %v108
    %v328 = vunpack.c.h.b16 %v108
    %v329 = vunpack.c.l.b16 %v109
    %v330 = vunpack.c.h.b16 %v109
    %v331 = vunpack.c.l.b16 %v110
    %v332 = vunpack.c.h.b16 %v110
    %v333 = vunpack.c.l.b16 %v111
    %v334 = vunpack.c.h.b16 %v111
    %v335 = vunpack.c.l.b16 %v112
    %v336 = vunpack.c.h.b16 %v112
    %v337 = vunpack.c.l.b16 %v113
    %v338 = vunpack.c.h.b16 %v113
    %v339 = vunpack.c.l.b16 %v114
    %v340 = vunpack.c.l.b16 %v115
    %v341 = vunpack.c.h.b16 %v115
    %v342 = vunpack.c.l.b16 %v116
    %v343 = vunpack.c.h.b16 %v116
    %v344 = vunpack.c.l.b16 %v117
    %v345 = vunpack.c.h.b16 %v117
    %v346 = vunpack.c.l.b16 %v118
    %v347 = vunpack.c.h.b16 %v118
    %v348 = vunpack.c.l.b16 %v119
    %v349 = vunpack.c.h.b16 %v119
    %v350 = vunpack.c.l.b16 %v120
    %v351 = vunpack.c.h.b16 %v120
    %v352 = vunpack.c.l.b16 %v121
    %v353 = vunpack.c.h.b16 %v121
    %v354 = vunpack.c.l.b16 %v122
    %v355 = vpack.c.b16 %v220, %v205
    %v356 = vpack.c.b16 %v221, %v206
    %v357 = vpack.c.b16 %v222, %v207
    %v358 = vpack.c.b16 %v223, %v208
    %v359 = vpack.c.b16 %v224, %v209
    %v360 = vpack.c.b16 %v225, %v210
    %v361 = vpack.c.b16 %v226, %v211
    %v362 = vpack.c.b16 %v227, %v212
    %v363 = vpack.c.b16 %v228, %v213
    %v364 = vpack.c.b16 %v229, %v214
    %v365 = vpack.c.b16 %v230, %v215
    %v366 = vpack.c.b16 %v231, %v216
    %v367 = vpack.c.b16 %v232, %v217
    %v368 = vpack.c.b16 %v233, %v218
    %v369 = vpack.c.b16 %v234, %v219
    %v370 = vpack.c.b16 %v250, %v235
    %v371 = vpack.c.b16 %v251, %v236
    %v372 = vpack.c.b16 %v252, %v237
    %v373 = vpack.c.b16 %v253, %v238
    %v374 = vpack.c.b16 %v254, %v239
    %v375 = vpack.c.b16 %v255, %v240
    %v376 = vpack.c.b16 %v256, %v241
    %v377 = vpack.c.b16 %v257, %v242
    %v378 = vpack.c.b16 %v258, %v243
    %v379 = vpack.c.b16 %v259, %v244
    %v380 = vpack.c.b16 %v260, %v245
    %v381 = vpack.c.b16 %v261, %v246
    %v382 = vpack.c.b16 %v262, %v247
    %v383 = vpack.c.b16 %v263, %v248
    %v384 = vpack.c.b16 %v264, %v249
    %v385 = vpack.c.b16 %v280, %v265
    %v386 = vpack.c.b16 %v281, %v266
    %v387 = vpack.c.b16 %v282, %v267
    %v388 = vpack.c.b16 %v283, %v268
    %v389 = vpack.c.b16 %v284, %v269
    %v390 = vpack.c.b16 %v285, %v270
    %v391 = vpack.c.b16 %v286, %v271
    %v392 = vpack.c.b16 %v287, %v272
    %v393 = vpack.c.b16 %v288, %v273
    %v394 = vpack.c.b16 %v289, %v274
    %v395 = vpack.c.b16 %v290, %v275
    %v396 = vpack.c.b16 %v291, %v276
    %v397 = vpack.c.b16 %v292, %v277
    %v398 = vpack.c.b16 %v293, %v278
    %v399 = vpack.c.b16 %v294, %v279
    %v400 = vpack.c.b16 %v310, %v295
    %v401 = vpack.c.b16 %v311, %v296
    %v402 = vpack.c.b16 %v312, %v297
    %v403 = vpack.c.b16 %v313, %v298
    %v404 = vpack.c.b16 %v314, %v299
    %v405 = vpack.c.b16 %v315, %v300
    %v406 = vpack.c.b16 %v316, %v301
    %v407 = vpack.c.b16 %v317, %v302
    %v408 = vpack.c.b16 %v318, %v303
    %v409 = vpack.c.b16 %v319, %v304
    %v410 = vpack.c.b16 %v320, %v305
    %v411 = vpack.c.b16 %v321, %v306
    %v412 = vpack.c.b16 %v322, %v307
    %v413 = vpack.c.b16 %v323, %v308
    %v414 = vpack.c.b16 %v324, %v309
    %v415 = vpack.c.b16 %v340, %v325
    %v416 = vpack.c.b16 %v341, %v326
    %v417 = vpack.c.b16 %v342, %v327
    %v418 = vpack.c.b16 %v343, %v328
    %v419 = vpack.c.b16 %v344, %v329
    %v420 = vpack.c.b16 %v345, %v330
    %v421 = vpack.c.b16 %v346, %v331
    %v422 = vpack.c.b16 %v347, %v332
    %v423 = vpack.c.b16 %v348, %v333
    %v424 = vpack.c.b16 %v349, %v334
    %v425 = vpack.c.b16 %v350, %v335
    %v426 = vpack.c.b16 %v351, %v336
    %v427 = vpack.c.b16 %v352, %v337
    %v428 = vpack.c.b16 %v353, %v338
    %v429 = vpack.c.b16 %v354, %v339
    %v492 = vlaneseq
    %v493 = vshrl.u32 %v492, 7
    %v494 = vsub.s32 0, %v493
    %v495 = vrot.slane %v123, %v494
    %v496 = vlaneseq
    %v497 = vshrl.u32 %v496, 7
    %v498 = vsub.s32 1, %v497
    %v499 = vrot.slane %v123, %v498
    %v500 = vlaneseq
    %v501 = vshrl.u32 %v500, 7
    %v502 = vsub.s32 2, %v501
    %v503 = vrot.slane %v123, %v502
    %v504 = vlaneseq
    %v505 = vshrl.u32 %v504, 7
    %v506 = vsub.s32 3, %v505
    %v507 = vrot.slane %v123, %v506
    %v508 = vlaneseq
    %v509 = vshrl.u32 %v508, 7
    %v510 = vsub.s32 4, %v509
    %v511 = vrot.slane %v123, %v510
    %v512 = vlaneseq
    %v513 = vshrl.u32 %v512, 7
    %v514 = vsub.s32 5, %v513
    %v515 = vrot.slane %v123, %v514
    %v516 = vlaneseq
    %v517 = vshrl.u32 %v516, 7
    %v518 = vsub.s32 6, %v517
    %v519 = vrot.slane %v123, %v518
    %v520 = vlaneseq
    %v521 = vshrl.u32 %v520, 7
    %v522 = vsub.s32 7, %v521
    %v523 = vrot.slane %v123, %v522
    %v524 = vlaneseq
    %v525 = vshrl.u32 %v524, 7
    %v526 = vsub.s32 0, %v525
    %v527 = vrot.slane %v124, %v526
    %v528 = vlaneseq
    %v529 = vshrl.u32 %v528, 7
    %v530 = vsub.s32 1, %v529
    %v531 = vrot.slane %v124, %v530
    %v532 = vlaneseq
    %v533 = vshrl.u32 %v532, 7
    %v534 = vsub.s32 2, %v533
    %v535 = vrot.slane %v124, %v534
    %v536 = vlaneseq
    %v537 = vshrl.u32 %v536, 7
    %v538 = vsub.s32 3, %v537
    %v539 = vrot.slane %v124, %v538
    %v540 = vlaneseq
    %v541 = vshrl.u32 %v540, 7
    %v542 = vsub.s32 4, %v541
    %v543 = vrot.slane %v124, %v542
    %v544 = vlaneseq
    %v545 = vshrl.u32 %v544, 7
    %v546 = vsub.s32 5, %v545
    %v547 = vrot.slane %v124, %v546
    %v548 = vlaneseq
    %v549 = vshrl.u32 %v548, 7
    %v550 = vsub.s32 6, %v549
    %v551 = vrot.slane %v124, %v550
    %vm567 = vcmask 621568
    %v569 = vsel %vm567, %v42, 0
    %vm571 = vcmask 1045504
    %v573 = vsel %vm571, %v415, 0
    %v576 = vsel %vm571, %v416, 0
    %v579 = vsel %vm571, %v417, 0
    %v582 = vsel %vm571, %v418, 0
    %v585 = vsel %vm571, %v419, 0
    %v588 = vsel %vm571, %v420, 0
    %v591 = vsel %vm571, %v421, 0
    %v594 = vsel %vm571, %v422, 0
    %v597 = vsel %vm571, %v423, 0
    %v600 = vsel %vm571, %v424, 0
    %v603 = vsel %vm571, %v425, 0
    %v606 = vsel %vm571, %v426, 0
    %v609 = vsel %vm571, %v427, 0
    %v612 = vsel %vm571, %v428, 0
    %v615 = vsel %vm571, %v429, 0
    %617 = vmatprep.subr.bf16.mxu0 0
    %618 = vmatpush1.bf16.msra.mxu0 0
    %619 = vmatprep.subr.bf16.mxu0 0
    %620 = vmatpush1.bf16.msra.mxu0 0
    %621 = vmatprep.subr.bf16.mxu0 0
    %622 = vmatpush1.bf16.msra.mxu0 0
    %623 = vmatprep.subr.bf16.mxu0 %v576
    %624 = vmatpush1.bf16.msra.mxu0 %v573
    %625 = vmatprep.subr.bf16.mxu0 %v401
    %626 = vmatpush1.bf16.msra.mxu0 %v400
    %627 = vmatprep.subr.bf16.mxu0 %v386
    %628 = vmatpush1.bf16.msra.mxu0 %v385
    %629 = vmatprep.subr.bf16.mxu0 %v371
    %630 = vmatpush1.bf16.msra.mxu0 %v370
    %631 = vmatprep.subr.bf16.mxu0 %v356
    %632 = vmatpush1.bf16.msra.mxu0 %v355
    %633 = vmatprep.subr.bf16.mxu0 0
    %634 = vmatpush2.bf16.msra.mxu0 0
    %635 = vmatprep.subr.bf16.mxu0 0
    %636 = vmatpush2.bf16.msra.mxu0 0
    %637 = vmatprep.subr.bf16.mxu0 0
    %638 = vmatpush2.bf16.msra.mxu0 0
    %639 = vmatprep.subr.bf16.mxu0 0
    %640 = vmatpush2.bf16.msra.mxu0 0
    %641 = vmatprep.subr.bf16.mxu0 0
    %642 = vmatpush2.bf16.msra.mxu0 0
    %643 = vmatprep.subr.bf16.mxu0 0
    %644 = vmatpush2.bf16.msra.mxu0 0
    %645 = vmatprep.subr.bf16.mxu0 0
    %646 = vmatpush2.bf16.msra.mxu0 0
    %647 = vmatprep.subr.bf16.mxu0 0
    %648 = vmatpush2.bf16.msra.mxu0 0
    %649 = vmatprep.mubr.bf16.mxu0 0
    %650 = vmatmul.mubr.bf16.gmra.mxu0 %v569
    %v651 = vpop.f32.mrf.mxu0
    %v652 = vadd.f32 %v495, %v651
    %v653 = vpop.f32.mrf.mxu0
    %v654 = vadd.f32 %v499, %v653
    %v655 = vpop.f32.mrf.mxu0
    %v656 = vpop.f32.mrf.mxu0
    %657 = vdwg.mxu0
    %658 = vmatprep.subr.bf16.mxu0 0
    %659 = vmatpush1.bf16.msra.mxu0 0
    %660 = vmatprep.subr.bf16.mxu0 0
    %661 = vmatpush1.bf16.msra.mxu0 0
    %662 = vmatprep.subr.bf16.mxu0 0
    %663 = vmatpush1.bf16.msra.mxu0 0
    %664 = vmatprep.subr.bf16.mxu0 %v582
    %665 = vmatpush1.bf16.msra.mxu0 %v579
    %666 = vmatprep.subr.bf16.mxu0 %v403
    %667 = vmatpush1.bf16.msra.mxu0 %v402
    %668 = vmatprep.subr.bf16.mxu0 %v388
    %669 = vmatpush1.bf16.msra.mxu0 %v387
    %670 = vmatprep.subr.bf16.mxu0 %v373
    %671 = vmatpush1.bf16.msra.mxu0 %v372
    %672 = vmatprep.subr.bf16.mxu0 %v358
    %673 = vmatpush1.bf16.msra.mxu0 %v357
    %674 = vmatprep.subr.bf16.mxu0 0
    %675 = vmatpush2.bf16.msra.mxu0 0
    %676 = vmatprep.subr.bf16.mxu0 0
    %677 = vmatpush2.bf16.msra.mxu0 0
    %678 = vmatprep.subr.bf16.mxu0 0
    %679 = vmatpush2.bf16.msra.mxu0 0
    %680 = vmatprep.subr.bf16.mxu0 0
    %681 = vmatpush2.bf16.msra.mxu0 0
    %682 = vmatprep.subr.bf16.mxu0 0
    %683 = vmatpush2.bf16.msra.mxu0 0
    %684 = vmatprep.subr.bf16.mxu0 0
    %685 = vmatpush2.bf16.msra.mxu0 0
    %686 = vmatprep.subr.bf16.mxu0 0
    %687 = vmatpush2.bf16.msra.mxu0 0
    %688 = vmatprep.subr.bf16.mxu0 0
    %689 = vmatpush2.bf16.msra.mxu0 0
    %690 = vmatprep.mubr.bf16.mxu0 0
    %691 = vmatmul.mubr.bf16.gmra.mxu0 %v569
    %v692 = vpop.f32.mrf.mxu0
    %v693 = vadd.f32 %v503, %v692
    %v694 = vpop.f32.mrf.mxu0
    %v695 = vadd.f32 %v507, %v694
    %v696 = vpop.f32.mrf.mxu0
    %v697 = vpop.f32.mrf.mxu0
    %698 = vdwg.mxu0
    %699 = vmatprep.subr.bf16.mxu0 0
    %700 = vmatpush1.bf16.msra.mxu0 0
    %701 = vmatprep.subr.bf16.mxu0 0
    %702 = vmatpush1.bf16.msra.mxu0 0
    %703 = vmatprep.subr.bf16.mxu0 0
    %704 = vmatpush1.bf16.msra.mxu0 0
    %705 = vmatprep.subr.bf16.mxu0 %v588
    %706 = vmatpush1.bf16.msra.mxu0 %v585
    %707 = vmatprep.subr.bf16.mxu0 %v405
    %708 = vmatpush1.bf16.msra.mxu0 %v404
    %709 = vmatprep.subr.bf16.mxu0 %v390
    %710 = vmatpush1.bf16.msra.mxu0 %v389
    %711 = vmatprep.subr.bf16.mxu0 %v375
    %712 = vmatpush1.bf16.msra.mxu0 %v374
    %713 = vmatprep.subr.bf16.mxu0 %v360
    %714 = vmatpush1.bf16.msra.mxu0 %v359
    %715 = vmatprep.subr.bf16.mxu0 0
    %716 = vmatpush2.bf16.msra.mxu0 0
    %717 = vmatprep.subr.bf16.mxu0 0
    %718 = vmatpush2.bf16.msra.mxu0 0
    %719 = vmatprep.subr.bf16.mxu0 0
    %720 = vmatpush2.bf16.msra.mxu0 0
    %721 = vmatprep.subr.bf16.mxu0 0
    %722 = vmatpush2.bf16.msra.mxu0 0
    %723 = vmatprep.subr.bf16.mxu0 0
    %724 = vmatpush2.bf16.msra.mxu0 0
    %725 = vmatprep.subr.bf16.mxu0 0
    %726 = vmatpush2.bf16.msra.mxu0 0
    %727 = vmatprep.subr.bf16.mxu0 0
    %728 = vmatpush2.bf16.msra.mxu0 0
    %729 = vmatprep.subr.bf16.mxu0 0
    %730 = vmatpush2.bf16.msra.mxu0 0
    %731 = vmatprep.mubr.bf16.mxu0 0
    %732 = vmatmul.mubr.bf16.gmra.mxu0 %v569
    %v733 = vpop.f32.mrf.mxu0
    %v734 = vadd.f32 %v511, %v733
    %v735 = vpop.f32.mrf.mxu0
    %v736 = vadd.f32 %v515, %v735
    %v737 = vpop.f32.mrf.mxu0
    %v738 = vpop.f32.mrf.mxu0
    %739 = vdwg.mxu0
    %740 = vmatprep.subr.bf16.mxu0 0
    %741 = vmatpush1.bf16.msra.mxu0 0
    %742 = vmatprep.subr.bf16.mxu0 0
    %743 = vmatpush1.bf16.msra.mxu0 0
    %744 = vmatprep.subr.bf16.mxu0 0
    %745 = vmatpush1.bf16.msra.mxu0 0
    %746 = vmatprep.subr.bf16.mxu0 %v594
    %747 = vmatpush1.bf16.msra.mxu0 %v591
    %748 = vmatprep.subr.bf16.mxu0 %v407
    %749 = vmatpush1.bf16.msra.mxu0 %v406
    %750 = vmatprep.subr.bf16.mxu0 %v392
    %751 = vmatpush1.bf16.msra.mxu0 %v391
    %752 = vmatprep.subr.bf16.mxu0 %v377
    %753 = vmatpush1.bf16.msra.mxu0 %v376
    %754 = vmatprep.subr.bf16.mxu0 %v362
    %755 = vmatpush1.bf16.msra.mxu0 %v361
    %756 = vmatprep.subr.bf16.mxu0 0
    %757 = vmatpush2.bf16.msra.mxu0 0
    %758 = vmatprep.subr.bf16.mxu0 0
    %759 = vmatpush2.bf16.msra.mxu0 0
    %760 = vmatprep.subr.bf16.mxu0 0
    %761 = vmatpush2.bf16.msra.mxu0 0
    %762 = vmatprep.subr.bf16.mxu0 0
    %763 = vmatpush2.bf16.msra.mxu0 0
    %764 = vmatprep.subr.bf16.mxu0 0
    %765 = vmatpush2.bf16.msra.mxu0 0
    %766 = vmatprep.subr.bf16.mxu0 0
    %767 = vmatpush2.bf16.msra.mxu0 0
    %768 = vmatprep.subr.bf16.mxu0 0
    %769 = vmatpush2.bf16.msra.mxu0 0
    %770 = vmatprep.subr.bf16.mxu0 0
    %771 = vmatpush2.bf16.msra.mxu0 0
    %772 = vmatprep.mubr.bf16.mxu0 0
    %773 = vmatmul.mubr.bf16.gmra.mxu0 %v569
    %v774 = vpop.f32.mrf.mxu0
    %v775 = vadd.f32 %v519, %v774
    %v776 = vpop.f32.mrf.mxu0
    %v777 = vadd.f32 %v523, %v776
    %v778 = vpop.f32.mrf.mxu0
    %v779 = vpop.f32.mrf.mxu0
    %780 = vdwg.mxu0
    %781 = vmatprep.subr.bf16.mxu0 0
    %782 = vmatpush1.bf16.msra.mxu0 0
    %783 = vmatprep.subr.bf16.mxu0 0
    %784 = vmatpush1.bf16.msra.mxu0 0
    %785 = vmatprep.subr.bf16.mxu0 0
    %786 = vmatpush1.bf16.msra.mxu0 0
    %787 = vmatprep.subr.bf16.mxu0 %v600
    %788 = vmatpush1.bf16.msra.mxu0 %v597
    %789 = vmatprep.subr.bf16.mxu0 %v409
    %790 = vmatpush1.bf16.msra.mxu0 %v408
    %791 = vmatprep.subr.bf16.mxu0 %v394
    %792 = vmatpush1.bf16.msra.mxu0 %v393
    %793 = vmatprep.subr.bf16.mxu0 %v379
    %794 = vmatpush1.bf16.msra.mxu0 %v378
    %795 = vmatprep.subr.bf16.mxu0 %v364
    %796 = vmatpush1.bf16.msra.mxu0 %v363
    %797 = vmatprep.subr.bf16.mxu0 0
    %798 = vmatpush2.bf16.msra.mxu0 0
    %799 = vmatprep.subr.bf16.mxu0 0
    %800 = vmatpush2.bf16.msra.mxu0 0
    %801 = vmatprep.subr.bf16.mxu0 0
    %802 = vmatpush2.bf16.msra.mxu0 0
    %803 = vmatprep.subr.bf16.mxu0 0
    %804 = vmatpush2.bf16.msra.mxu0 0
    %805 = vmatprep.subr.bf16.mxu0 0
    %806 = vmatpush2.bf16.msra.mxu0 0
    %807 = vmatprep.subr.bf16.mxu0 0
    %808 = vmatpush2.bf16.msra.mxu0 0
    %809 = vmatprep.subr.bf16.mxu0 0
    %810 = vmatpush2.bf16.msra.mxu0 0
    %811 = vmatprep.subr.bf16.mxu0 0
    %812 = vmatpush2.bf16.msra.mxu0 0
    %813 = vmatprep.mubr.bf16.mxu0 0
    %814 = vmatmul.mubr.bf16.gmra.mxu0 %v569
    %v815 = vpop.f32.mrf.mxu0
    %v816 = vadd.f32 %v527, %v815
    %v817 = vpop.f32.mrf.mxu0
    %v818 = vadd.f32 %v531, %v817
    %v819 = vpop.f32.mrf.mxu0
    %v820 = vpop.f32.mrf.mxu0
    %821 = vdwg.mxu0
    %822 = vmatprep.subr.bf16.mxu0 0
    %823 = vmatpush1.bf16.msra.mxu0 0
    %824 = vmatprep.subr.bf16.mxu0 0
    %825 = vmatpush1.bf16.msra.mxu0 0
    %826 = vmatprep.subr.bf16.mxu0 0
    %827 = vmatpush1.bf16.msra.mxu0 0
    %828 = vmatprep.subr.bf16.mxu0 %v606
    %829 = vmatpush1.bf16.msra.mxu0 %v603
    %830 = vmatprep.subr.bf16.mxu0 %v411
    %831 = vmatpush1.bf16.msra.mxu0 %v410
    %832 = vmatprep.subr.bf16.mxu0 %v396
    %833 = vmatpush1.bf16.msra.mxu0 %v395
    %834 = vmatprep.subr.bf16.mxu0 %v381
    %835 = vmatpush1.bf16.msra.mxu0 %v380
    %836 = vmatprep.subr.bf16.mxu0 %v366
    %837 = vmatpush1.bf16.msra.mxu0 %v365
    %838 = vmatprep.subr.bf16.mxu0 0
    %839 = vmatpush2.bf16.msra.mxu0 0
    %840 = vmatprep.subr.bf16.mxu0 0
    %841 = vmatpush2.bf16.msra.mxu0 0
    %842 = vmatprep.subr.bf16.mxu0 0
    %843 = vmatpush2.bf16.msra.mxu0 0
    %844 = vmatprep.subr.bf16.mxu0 0
    %845 = vmatpush2.bf16.msra.mxu0 0
    %846 = vmatprep.subr.bf16.mxu0 0
    %847 = vmatpush2.bf16.msra.mxu0 0
    %848 = vmatprep.subr.bf16.mxu0 0
    %849 = vmatpush2.bf16.msra.mxu0 0
    %850 = vmatprep.subr.bf16.mxu0 0
    %851 = vmatpush2.bf16.msra.mxu0 0
    %852 = vmatprep.subr.bf16.mxu0 0
    %853 = vmatpush2.bf16.msra.mxu0 0
    %854 = vmatprep.mubr.bf16.mxu0 0
    %855 = vmatmul.mubr.bf16.gmra.mxu0 %v569
    %v856 = vpop.f32.mrf.mxu0
    %v857 = vadd.f32 %v535, %v856
    %v858 = vpop.f32.mrf.mxu0
    %v859 = vadd.f32 %v539, %v858
    %v860 = vpop.f32.mrf.mxu0
    %v861 = vpop.f32.mrf.mxu0
    %862 = vdwg.mxu0
    %863 = vmatprep.subr.bf16.mxu0 0
    %864 = vmatpush1.bf16.msra.mxu0 0
    %865 = vmatprep.subr.bf16.mxu0 0
    %866 = vmatpush1.bf16.msra.mxu0 0
    %867 = vmatprep.subr.bf16.mxu0 0
    %868 = vmatpush1.bf16.msra.mxu0 0
    %869 = vmatprep.subr.bf16.mxu0 %v612
    %870 = vmatpush1.bf16.msra.mxu0 %v609
    %871 = vmatprep.subr.bf16.mxu0 %v413
    %872 = vmatpush1.bf16.msra.mxu0 %v412
    %873 = vmatprep.subr.bf16.mxu0 %v398
    %874 = vmatpush1.bf16.msra.mxu0 %v397
    %875 = vmatprep.subr.bf16.mxu0 %v383
    %876 = vmatpush1.bf16.msra.mxu0 %v382
    %877 = vmatprep.subr.bf16.mxu0 %v368
    %878 = vmatpush1.bf16.msra.mxu0 %v367
    %879 = vmatprep.subr.bf16.mxu0 0
    %880 = vmatpush2.bf16.msra.mxu0 0
    %881 = vmatprep.subr.bf16.mxu0 0
    %882 = vmatpush2.bf16.msra.mxu0 0
    %883 = vmatprep.subr.bf16.mxu0 0
    %884 = vmatpush2.bf16.msra.mxu0 0
    %885 = vmatprep.subr.bf16.mxu0 0
    %886 = vmatpush2.bf16.msra.mxu0 0
    %887 = vmatprep.subr.bf16.mxu0 0
    %888 = vmatpush2.bf16.msra.mxu0 0
    %889 = vmatprep.subr.bf16.mxu0 0
    %890 = vmatpush2.bf16.msra.mxu0 0
    %891 = vmatprep.subr.bf16.mxu0 0
    %892 = vmatpush2.bf16.msra.mxu0 0
    %893 = vmatprep.subr.bf16.mxu0 0
    %894 = vmatpush2.bf16.msra.mxu0 0
    %895 = vmatprep.mubr.bf16.mxu0 0
    %896 = vmatmul.mubr.bf16.gmra.mxu0 %v569
    %v897 = vpop.f32.mrf.mxu0
    %v898 = vadd.f32 %v543, %v897
    %v899 = vpop.f32.mrf.mxu0
    %v900 = vadd.f32 %v547, %v899
    %v901 = vpop.f32.mrf.mxu0
    %v902 = vpop.f32.mrf.mxu0
    %903 = vdwg.mxu0
    %904 = vmatprep.subr.bf16.mxu0 0
    %905 = vmatpush1.bf16.msra.mxu0 0
    %906 = vmatprep.subr.bf16.mxu0 0
    %907 = vmatpush1.bf16.msra.mxu0 0
    %908 = vmatprep.subr.bf16.mxu0 0
    %909 = vmatpush1.bf16.msra.mxu0 0
    %910 = vmatprep.subr.bf16.mxu0 0
    %911 = vmatpush1.bf16.msra.mxu0 %v615
    %912 = vmatprep.subr.bf16.mxu0 0
    %913 = vmatpush1.bf16.msra.mxu0 %v414
    %914 = vmatprep.subr.bf16.mxu0 0
    %915 = vmatpush1.bf16.msra.mxu0 %v399
    %916 = vmatprep.subr.bf16.mxu0 0
    %917 = vmatpush1.bf16.msra.mxu0 %v384
    %918 = vmatprep.subr.bf16.mxu0 0
    %919 = vmatpush1.bf16.msra.mxu0 %v369
    %920 = vmatprep.subr.bf16.mxu0 0
    %921 = vmatpush2.bf16.msra.mxu0 0
    %922 = vmatprep.subr.bf16.mxu0 0
    %923 = vmatpush2.bf16.msra.mxu0 0
    %924 = vmatprep.subr.bf16.mxu0 0
    %925 = vmatpush2.bf16.msra.mxu0 0
    %926 = vmatprep.subr.bf16.mxu0 0
    %927 = vmatpush2.bf16.msra.mxu0 0
    %928 = vmatprep.subr.bf16.mxu0 0
    %929 = vmatpush2.bf16.msra.mxu0 0
    %930 = vmatprep.subr.bf16.mxu0 0
    %931 = vmatpush2.bf16.msra.mxu0 0
    %932 = vmatprep.subr.bf16.mxu0 0
    %933 = vmatpush2.bf16.msra.mxu0 0
    %934 = vmatprep.subr.bf16.mxu0 0
    %935 = vmatpush2.bf16.msra.mxu0 0
    %936 = vmatprep.mubr.bf16.mxu0 0
    %937 = vmatmul.mubr.bf16.gmra.mxu0 %v569
    %v938 = vpop.f32.mrf.mxu0
    %v939 = vadd.f32 %v551, %v938
    %v940 = vpop.f32.mrf.mxu0
    %v941 = vpop.f32.mrf.mxu0
    %v942 = vpop.f32.mrf.mxu0
    %943 = vdwg.mxu0
    %v944 = vmul.f32 %v652, 0.5
    %v945 = vmul.f32 %v654, 0.5
    %v946 = vmul.f32 %v693, 0.5
    %v947 = vmul.f32 %v695, 0.5
    %v948 = vmul.f32 %v734, 0.5
    %v949 = vmul.f32 %v736, 0.5
    %v950 = vmul.f32 %v775, 0.5
    %v951 = vmul.f32 %v777, 0.5
    %v952 = vmul.f32 %v816, 0.5
    %v953 = vmul.f32 %v818, 0.5
    %v954 = vmul.f32 %v857, 0.5
    %v955 = vmul.f32 %v859, 0.5
    %v956 = vmul.f32 %v898, 0.5
    %v957 = vmul.f32 %v900, 0.5
    %v958 = vmul.f32 %v939, 0.5
    %v959 = vtanh.pop %v944
    %v960 = vtanh.pop %v945
    %v961 = vtanh.pop %v946
    %v962 = vtanh.pop %v947
    %v963 = vtanh.pop %v948
    %v964 = vtanh.pop %v949
    %v965 = vtanh.pop %v950
    %v966 = vtanh.pop %v951
    %v967 = vtanh.pop %v952
    %v968 = vtanh.pop %v953
    %v969 = vtanh.pop %v954
    %v970 = vtanh.pop %v955
    %v971 = vtanh.pop %v956
    %v972 = vtanh.pop %v957
    %v973 = vtanh.pop %v958
    %v974 = vmul.f32 %v959, 0.5
    %v975 = vmul.f32 %v960, 0.5
    %v976 = vmul.f32 %v961, 0.5
    %v977 = vmul.f32 %v962, 0.5
    %v978 = vmul.f32 %v963, 0.5
    %v979 = vmul.f32 %v964, 0.5
    %v980 = vmul.f32 %v965, 0.5
    %v981 = vmul.f32 %v966, 0.5
    %v982 = vmul.f32 %v967, 0.5
    %v983 = vmul.f32 %v968, 0.5
    %v984 = vmul.f32 %v969, 0.5
    %v985 = vmul.f32 %v970, 0.5
    %v986 = vmul.f32 %v971, 0.5
    %v987 = vmul.f32 %v972, 0.5
    %v988 = vmul.f32 %v973, 0.5
    %v989 = vadd.f32 %v974, 0.5
    %v990 = vadd.f32 %v975, 0.5
    %v991 = vadd.f32 %v976, 0.5
    %v992 = vadd.f32 %v977, 0.5
    %v993 = vadd.f32 %v978, 0.5
    %v994 = vadd.f32 %v979, 0.5
    %v995 = vadd.f32 %v980, 0.5
    %v996 = vadd.f32 %v981, 0.5
    %v997 = vadd.f32 %v982, 0.5
    %v998 = vadd.f32 %v983, 0.5
    %v999 = vadd.f32 %v984, 0.5
    %v1000 = vadd.f32 %v985, 0.5
    %v1001 = vadd.f32 %v986, 0.5
    %v1002 = vadd.f32 %v987, 0.5
    %v1003 = vadd.f32 %v988, 0.5
    %v1019 = vcombine.low %v989, %v990
    %v1020 = vcombine.low %v991, %v992
    %v1021 = vcombine.low %v993, %v994
    %v1022 = vcombine.low %v995, %v996
    %v1024 = vunpack.c.l.s4 1966171168
    %v1025 = vunpack.c.0.s8 %v1024
    %v1026 = vlaneseq
    %v1027 = vshrl.u32 %v1026, 7
    %v1028 = vsub.s32 %v1025, %v1027
    %v1029 = vrot.slane %v1019, %v1028
    %v1031 = vunpack.c.l.s4 1966171168
    %v1032 = vunpack.c.0.s8 %v1031
    %v1033 = vlaneseq
    %v1034 = vshrl.u32 %v1033, 7
    %v1035 = vsub.s32 %v1032, %v1034
    %v1036 = vrot.slane %v1020, %v1035
    %v1038 = vunpack.c.l.s4 1966171168
    %v1039 = vunpack.c.0.s8 %v1038
    %v1040 = vlaneseq
    %v1041 = vshrl.u32 %v1040, 7
    %v1042 = vsub.s32 %v1039, %v1041
    %v1043 = vrot.slane %v1021, %v1042
    %v1045 = vunpack.c.l.s4 1966171168
    %v1046 = vunpack.c.0.s8 %v1045
    %v1047 = vlaneseq
    %v1048 = vshrl.u32 %v1047, 7
    %v1049 = vsub.s32 %v1046, %v1048
    %v1050 = vrot.slane %v1022, %v1049
    %v1051 = vcombine.low %v1029, %v1036
    %v1052 = vcombine.low %v1043, %v1050
    %v1054 = vunpack.c.l.s4 1966171168
    %v1055 = vunpack.c.0.s8 %v1054
    %v1056 = vlaneseq
    %v1057 = vshrl.u32 %v1056, 7
    %v1058 = vsub.s32 %v1055, %v1057
    %v1059 = vrot.slane %v1051, %v1058
    %v1061 = vunpack.c.l.s4 1966171168
    %v1062 = vunpack.c.0.s8 %v1061
    %v1063 = vlaneseq
    %v1064 = vshrl.u32 %v1063, 7
    %v1065 = vsub.s32 %v1062, %v1064
    %v1066 = vrot.slane %v1052, %v1065
    %v1067 = vcombine.low %v1059, %v1066
    %v1068 = vcombine.low %v997, %v998
    %v1069 = vcombine.low %v999, %v1000
    %v1070 = vcombine.low %v1001, %v1002
    %v1072 = vunpack.c.l.s4 1966171168
    %v1073 = vunpack.c.0.s8 %v1072
    %v1074 = vlaneseq
    %v1075 = vshrl.u32 %v1074, 7
    %v1076 = vsub.s32 %v1073, %v1075
    %v1077 = vrot.slane %v1068, %v1076
    %v1079 = vunpack.c.l.s4 1966171168
    %v1080 = vunpack.c.0.s8 %v1079
    %v1081 = vlaneseq
    %v1082 = vshrl.u32 %v1081, 7
    %v1083 = vsub.s32 %v1080, %v1082
    %v1084 = vrot.slane %v1069, %v1083
    %v1086 = vunpack.c.l.s4 1966171168
    %v1087 = vunpack.c.0.s8 %v1086
    %v1088 = vlaneseq
    %v1089 = vshrl.u32 %v1088, 7
    %v1090 = vsub.s32 %v1087, %v1089
    %v1091 = vrot.slane %v1070, %v1090
    %v1093 = vunpack.c.l.s4 1966171168
    %v1094 = vunpack.c.0.s8 %v1093
    %v1095 = vlaneseq
    %v1096 = vshrl.u32 %v1095, 7
    %v1097 = vsub.s32 %v1094, %v1096
    %v1098 = vrot.slane %v1003, %v1097
    %v1099 = vcombine.low %v1077, %v1084
    %v1100 = vcombine.low %v1091, %v1098
    %v1102 = vunpack.c.l.s4 1966171168
    %v1103 = vunpack.c.0.s8 %v1102
    %v1104 = vlaneseq
    %v1105 = vshrl.u32 %v1104, 7
    %v1106 = vsub.s32 %v1103, %v1105
    %v1107 = vrot.slane %v1099, %v1106
    %v1109 = vunpack.c.l.s4 1966171168
    %v1110 = vunpack.c.0.s8 %v1109
    %v1111 = vlaneseq
    %v1112 = vshrl.u32 %v1111, 7
    %v1113 = vsub.s32 %v1110, %v1112
    %v1114 = vrot.slane %v1100, %v1113
    %v1115 = vcombine.low %v1107, %v1114
    %1118 = vst [vmem:[%s3] sm:$0xff] %v1067
    %v1119 = vlaneseq
    %vm1120 = vcmp.ge.s32.totalorder %v1119, 0
    %vm1121 = vcmp.lt.s32.totalorder %v1119, 896
    %vm1122 = vmand %vm1120, %vm1121
    %1123 = vst.msk [vmem:[%s3 + $0x8] sm:$0x7f] %vm1122, %v1115
    // Predicated region
    $region22: #{conv2d_1x1_sigmoid.1} parent=1 // pred_check
      _
    $region23: #{conv2d_1x1_sigmoid.1} parent=1 // pred_check_branch
      %1125 = sbr.rel (0) target = $region25
    $region24: #{conv2d_1x1_sigmoid.1} parent=1 // pred_region
      _
    $region25: #{conv2d_1x1_sigmoid.1} parent=1 // pred_fallthru
      _
    // Predicated region
    $region26: #{conv2d_1x1_sigmoid.1} parent=1 // pred_check
      _
    $region27: #{conv2d_1x1_sigmoid.1} parent=1 // pred_check_branch
      %1127 = sbr.rel (0) target = $region29
    $region28: #{conv2d_1x1_sigmoid.1} parent=1 // pred_region
      _
    $region29: #{conv2d_1x1_sigmoid.1} parent=1 // pred_fallthru
      _
    %1128 = vsyncpa [#allocation3], 1
    %1129 = vsyncpa [#allocation5], 1

</llo_original>
